<compile_context>
chip_gen: v7x
topology: tpu7x:2x2x1
jax: 0.10.0
libtpu: 0.0.40
codegen_flags: <defaults>
</compile_context>

<pallas_src>
import jax
import jax.numpy as jnp
from jax import lax
from jax.experimental import pallas as pl
from jax.experimental.pallas import tpu as pltpu

# --- hyperparameters (small, consistent with the module's __init__) ---------
EMBED_DIM = 32       # embedding_dim
GNN_HIDDEN = 32      # gnn_hidden_dim (== EMBED_DIM: every GCNConv in the
                     # ModuleList maps embedding_dim -> gnn_hidden_dim, so
                     # stacking >1 layer requires them equal)
NUM_LAYERS = 2       # num_layers
DROPOUT = 0.1        # dropout_rate (identity in eval mode)
NUM_NODES = 16       # graph nodes
NUM_EDGES = 40       # directed edges in edge_index (self-loops added inside)


def _gcn_kernel(edge_ref, x_ref, w_ref, b_ref, out_ref):
    """edge_ref: (2, E) int32  (row 0 = source, row 1 = target, PyTorch layout)
       x_ref:    (N, F) f32 node features
       w_ref:    (L, F, F) f32  per-layer weight, pre-transposed to (in, out)
       b_ref:    (L, 1, F) f32  per-layer bias
       out_ref:  (N, F) f32"""
    N = x_ref.shape[0]
    E = edge_ref.shape[1]

    src = edge_ref[0:1, :]                                   # (1, E)
    dst = edge_ref[1:2, :]                                   # (1, E)

    # One-hot edge endpoint matrices via iota compares (VPU only, no scatter).
    node_ids = lax.broadcasted_iota(jnp.int32, (N, E), 0)    # node index per row
    src_oh = (node_ids == src).astype(jnp.float32)           # src_oh[j, e] = (src[e] == j)
    dst_oh = (node_ids == dst).astype(jnp.float32)           # dst_oh[i, e] = (dst[e] == i)

    # A[i, j] = #edges j -> i, as one trans-B MXU matmul (contract over edges).
    adj = lax.dot_general(dst_oh, src_oh,
                          dimension_numbers=(((1,), (1,)), ((), ())),
                          preferred_element_type=jnp.float32)          # (N, N)
    ii = lax.broadcasted_iota(jnp.int32, (N, N), 0)
    jj = lax.broadcasted_iota(jnp.int32, (N, N), 1)
    adj = adj + (ii == jj).astype(jnp.float32)               # add self-loops (A + I)

    # Symmetric normalization: D^{-1/2} (A+I) D^{-1/2}, deg over targets.
    deg = jnp.sum(adj, axis=1, keepdims=True)                # (N, 1), >= 1
    dinv = lax.rsqrt(deg)                                    # EUP slot, no div

    x = x_ref[...]
    for l in range(NUM_LAYERS):                              # static unroll
        w = w_ref[l]                                         # (F_in, F_out)
        b = b_ref[l]                                         # (1, F_out)
        h = jnp.dot(x, w, preferred_element_type=jnp.float32)        # X @ W^T
        h = dinv * h                                                  # D^{-1/2} .
        h = jnp.dot(adj, h, preferred_element_type=jnp.float32)      # (A+I) @ .
        h = dinv * h + b                                              # D^{-1/2} . + bias
        x = jnp.maximum(h, 0.0)                                       # ReLU
        # TODO(synk): nn.Dropout is identity in eval mode; training-mode
        # stochastic dropout (pltpu.prng_seed/prng_random_bits) not implemented.
    out_ref[...] = x


def prepare_params(params):
    """One-time host prep OUTSIDE jit: stack layers and pre-transpose weights."""
    w_stack = jnp.stack([params[f"weight_{l}"].T for l in range(NUM_LAYERS)])      # (L, F, F)
    b_stack = jnp.stack([params[f"bias_{l}"].reshape(1, -1) for l in range(NUM_LAYERS)])  # (L, 1, F)
    return w_stack, b_stack


@jax.jit
def gnn_forward(x, edge_index, w_stack, b_stack):
    """x: (N, EMBED_DIM) f32, edge_index: (2, E) int32 -> (N, GNN_HIDDEN) f32."""
    vmem = pl.BlockSpec(memory_space=pltpu.MemorySpace.VMEM)
    return pl.pallas_call(
        _gcn_kernel,
        out_shape=jax.ShapeDtypeStruct((x.shape[0], GNN_HIDDEN), jnp.float32),
        in_specs=[vmem, vmem, vmem, vmem],
        out_specs=vmem,
    )(edge_index, x, w_stack, b_stack)


# ---------------------- pure-JAX reference (for checking) -------------------
def _reference(x, edge_index, params):
    N = x.shape[0]
    hp = lax.Precision.HIGHEST
    src, dst = edge_index[0], edge_index[1]
    loops = jnp.arange(N, dtype=edge_index.dtype)
    src_f = jnp.concatenate([src, loops])
    dst_f = jnp.concatenate([dst, loops])
    deg = jnp.zeros((N,), jnp.float32).at[dst_f].add(1.0)
    dis = 1.0 / jnp.sqrt(deg)
    norm = dis[src_f] * dis[dst_f]                        # per-edge norm (PyG gcn_norm)
    for l in range(NUM_LAYERS):
        w = params[f"weight_{l}"]
        b = params[f"bias_{l}"]
        h = jnp.dot(x, w.T, precision=hp)                 # GCNConv.lin (no bias)
        msg = norm[:, None] * h[src_f]                    # messages along edges
        agg = jnp.zeros_like(h).at[dst_f].add(msg)        # sum-aggregate at targets
        x = jax.nn.relu(agg + b)                          # bias after aggregation
        # dropout: identity (eval mode)
    return x


def _init_params(key):
    params = {}
    for l in range(NUM_LAYERS):
        key, kw, kb = jax.random.split(key, 3)
        params[f"weight_{l}"] = jax.random.uniform(
            kw, (GNN_HIDDEN, EMBED_DIM), jnp.float32, -0.3, 0.3)   # PyTorch (out, in)
        params[f"bias_{l}"] = jax.random.uniform(
            kb, (GNN_HIDDEN,), jnp.float32, -0.3, 0.3)
    return params


if __name__ == "__main__":
    key = jax.random.PRNGKey(0)
    key, xkey, ekey, pkey = jax.random.split(key, 4)

    x = jax.random.normal(xkey, (NUM_NODES, EMBED_DIM), jnp.float32)
    edge_index = jax.random.randint(ekey, (2, NUM_EDGES), 0, NUM_NODES,
                                    dtype=jnp.int32)
    params = _init_params(pkey)
    w_stack, b_stack = prepare_params(params)   # host prep done once, outside jit

    out = gnn_forward(x, edge_index, w_stack, b_stack)
    out = jax.block_until_ready(out)
    assert out.shape == (NUM_NODES, GNN_HIDDEN), out.shape

    ref = jax.block_until_ready(_reference(x, edge_index, params))
    max_err = float(jnp.max(jnp.abs(out - ref)))
    assert jnp.allclose(out, ref, atol=2e-3, rtol=2e-3), max_err

    print("KERNEL_OK")
</pallas_src>

<mosaic_0001>
module attributes {stable_mosaic.version = 11 : i64} {
  func.func @_gcn_kernel(%arg0: memref<2x40xi32, #tpu.memory_space<vmem>>, %arg1: memref<16x32xf32, #tpu.memory_space<vmem>>, %arg2: memref<2x32x32xf32, #tpu.memory_space<vmem>>, %arg3: memref<2x1x32xf32, #tpu.memory_space<vmem>>, %arg4: memref<16x32xf32, #tpu.memory_space<vmem>>) attributes {dimension_semantics = [], scalar_prefetch = 0 : i64, scratch_operands = 0 : i64, tpu.core_type = #tpu.core_type<tc>} {
    %c0 = arith.constant 0 : index
    %c0_0 = arith.constant 0 : index
    %0 = vector.load %arg0[%c0, %c0_0] : memref<2x40xi32, #tpu.memory_space<vmem>>, vector<1x40xi32>
    %c1 = arith.constant 1 : index
    %c0_1 = arith.constant 0 : index
    %1 = vector.load %arg0[%c1, %c0_1] : memref<2x40xi32, #tpu.memory_space<vmem>>, vector<1x40xi32>
    %2 = tpu.iota {dimensions = array<i32: 0>} : vector<16x40xi32>
    %3 = vector.broadcast %0 : vector<1x40xi32> to vector<16x40xi32>
    %4 = arith.cmpi eq, %2, %3 : vector<16x40xi32>
    %5 = arith.extui %4 : vector<16x40xi1> to vector<16x40xi32>
    %6 = arith.sitofp %5 : vector<16x40xi32> to vector<16x40xf32>
    %7 = vector.broadcast %1 : vector<1x40xi32> to vector<16x40xi32>
    %8 = arith.cmpi eq, %2, %7 : vector<16x40xi32>
    %9 = arith.extui %8 : vector<16x40xi1> to vector<16x40xi32>
    %10 = arith.sitofp %9 : vector<16x40xi32> to vector<16x40xf32>
    %cst = arith.constant dense<0.000000e+00> : vector<16x16xf32>
    %11 = tpu.matmul %10, %6, %cst {dimension_numbers = #tpu.dot_dimension_numbers<[1], [1], [0], [0], [0, 0, 1, 0], [], []>} : vector<16x40xf32>, vector<16x40xf32>, vector<16x16xf32> -> vector<16x16xf32>
    %12 = tpu.iota {dimensions = array<i32: 0>} : vector<16x16xi32>
    %13 = tpu.iota {dimensions = array<i32: 1>} : vector<16x16xi32>
    %14 = arith.cmpi eq, %12, %13 : vector<16x16xi32>
    %15 = arith.extui %14 : vector<16x16xi1> to vector<16x16xi32>
    %16 = arith.sitofp %15 : vector<16x16xi32> to vector<16x16xf32>
    %17 = arith.addf %11, %16 : vector<16x16xf32>
    %cst_2 = arith.constant dense<0.000000e+00> : vector<16xf32>
    %18 = vector.multi_reduction <add>, %17, %cst_2 [1] : vector<16x16xf32> to vector<16xf32>
    %19 = vector.shape_cast %18 : vector<16xf32> to vector<16x1xf32>
    %20 = math.rsqrt %19 : vector<16x1xf32>
    %c0_3 = arith.constant 0 : index
    %c0_4 = arith.constant 0 : index
    %21 = vector.load %arg1[%c0_3, %c0_4] : memref<16x32xf32, #tpu.memory_space<vmem>>, vector<16x32xf32>
    %c0_5 = arith.constant 0 : index
    %c0_6 = arith.constant 0 : index
    %c0_7 = arith.constant 0 : index
    %22 = vector.load %arg2[%c0_5, %c0_6, %c0_7] : memref<2x32x32xf32, #tpu.memory_space<vmem>>, vector<1x32x32xf32>
    %23 = vector.shape_cast %22 : vector<1x32x32xf32> to vector<32x32xf32>
    %c0_8 = arith.constant 0 : index
    %c0_9 = arith.constant 0 : index
    %c0_10 = arith.constant 0 : index
    %24 = vector.load %arg3[%c0_8, %c0_9, %c0_10] : memref<2x1x32xf32, #tpu.memory_space<vmem>>, vector<1x1x32xf32>
    %25 = vector.shape_cast %24 : vector<1x1x32xf32> to vector<1x32xf32>
    %cst_11 = arith.constant dense<0.000000e+00> : vector<16x32xf32>
    %26 = tpu.matmul %21, %23, %cst_11 {dimension_numbers = #tpu.dot_dimension_numbers<[1], [0], [0], [1], [0, 0, 1, 1], [], []>} : vector<16x32xf32>, vector<32x32xf32>, vector<16x32xf32> -> vector<16x32xf32>
    %27 = vector.broadcast %20 : vector<16x1xf32> to vector<16x32xf32>
    %28 = arith.mulf %27, %26 : vector<16x32xf32>
    %cst_12 = arith.constant dense<0.000000e+00> : vector<16x32xf32>
    %29 = tpu.matmul %17, %28, %cst_12 {dimension_numbers = #tpu.dot_dimension_numbers<[1], [0], [0], [1], [0, 0, 1, 1], [], []>} : vector<16x16xf32>, vector<16x32xf32>, vector<16x32xf32> -> vector<16x32xf32>
    %30 = vector.broadcast %20 : vector<16x1xf32> to vector<16x32xf32>
    %31 = arith.mulf %30, %29 : vector<16x32xf32>
    %32 = vector.broadcast %25 : vector<1x32xf32> to vector<16x32xf32>
    %33 = arith.addf %31, %32 : vector<16x32xf32>
    %cst_13 = arith.constant 0.000000e+00 : f32
    %34 = vector.broadcast %cst_13 : f32 to vector<16x32xf32>
    %35 = arith.maximumf %33, %34 : vector<16x32xf32>
    %c1_14 = arith.constant 1 : index
    %c0_15 = arith.constant 0 : index
    %c0_16 = arith.constant 0 : index
    %36 = vector.load %arg2[%c1_14, %c0_15, %c0_16] : memref<2x32x32xf32, #tpu.memory_space<vmem>>, vector<1x32x32xf32>
    %37 = vector.shape_cast %36 : vector<1x32x32xf32> to vector<32x32xf32>
    %c1_17 = arith.constant 1 : index
    %c0_18 = arith.constant 0 : index
    %c0_19 = arith.constant 0 : index
    %38 = vector.load %arg3[%c1_17, %c0_18, %c0_19] : memref<2x1x32xf32, #tpu.memory_space<vmem>>, vector<1x1x32xf32>
    %39 = vector.shape_cast %38 : vector<1x1x32xf32> to vector<1x32xf32>
    %cst_20 = arith.constant dense<0.000000e+00> : vector<16x32xf32>
    %40 = tpu.matmul %35, %37, %cst_20 {dimension_numbers = #tpu.dot_dimension_numbers<[1], [0], [0], [1], [0, 0, 1, 1], [], []>} : vector<16x32xf32>, vector<32x32xf32>, vector<16x32xf32> -> vector<16x32xf32>
    %41 = vector.broadcast %20 : vector<16x1xf32> to vector<16x32xf32>
    %42 = arith.mulf %41, %40 : vector<16x32xf32>
    %cst_21 = arith.constant dense<0.000000e+00> : vector<16x32xf32>
    %43 = tpu.matmul %17, %42, %cst_21 {dimension_numbers = #tpu.dot_dimension_numbers<[1], [0], [0], [1], [0, 0, 1, 1], [], []>} : vector<16x16xf32>, vector<16x32xf32>, vector<16x32xf32> -> vector<16x32xf32>
    %44 = vector.broadcast %20 : vector<16x1xf32> to vector<16x32xf32>
    %45 = arith.mulf %44, %43 : vector<16x32xf32>
    %46 = vector.broadcast %39 : vector<1x32xf32> to vector<16x32xf32>
    %47 = arith.addf %45, %46 : vector<16x32xf32>
    %cst_22 = arith.constant 0.000000e+00 : f32
    %48 = vector.broadcast %cst_22 : f32 to vector<16x32xf32>
    %49 = arith.maximumf %47, %48 : vector<16x32xf32>
    %c0_23 = arith.constant 0 : index
    %c0_24 = arith.constant 0 : index
    %50 = vector.load %arg4[%c0_23, %c0_24] : memref<16x32xf32, #tpu.memory_space<vmem>>, vector<16x32xf32>
    tpu.vector_store %arg4[%c0_23, %c0_24], %49 {strides = array<i32>} : memref<16x32xf32, #tpu.memory_space<vmem>>, vector<16x32xf32>,
    return
  }
}

</mosaic_0001>

<llo_original>
// kernel: gnn_forward.1
$region0: #{gnn_forward.1}
  #allocation0 [shape = 'u32[]', space=smem, size = 0x4, offset = 0x4, fixed_abs, tag = 'smem constant byte address 0x4 - core index']
  #allocation1 [shape = 'u32[144,128]{1,0:T(1,128)}', space=vmem, size = 0x12000, scoped, tag = 'internal scratch']
  %s0 = inlined_call_operand.vmem [shape: s32[2,40], index: 0, kind: input, shape index: {}]
  %s1 = inlined_call_operand.hbm [shape: f32[16,32], index: 1, kind: input, shape index: {}]
  %s2 = inlined_call_operand.hbm [shape: f32[2,32,32], index: 2, kind: input, shape index: {}]
  %s3 = inlined_call_operand.vmem [shape: f32[2,1,32], index: 3, kind: input, shape index: {}]
  %s4 = inlined_call_operand.hbm [shape: f32[16,32], index: 4, kind: output, shape index: {}]
  %s5 = sld [smem:[#allocation0]]
  $region34: #{gnn_forward.1} parent=0
    _
  %s7 = ssub.s32 1, %s5
  %s8 = scalar_select 0, %s7, %s5
  $region1: #{gnn_forward.1} parent=0
    #allocation2 [shape = 'u8[8192]{0}', space=vmem, size = 0x2000, scoped, tag = 'input window, operand 1, single buffered']
    #allocation3 [shape = 's32[1]{0}', space=sflag, size = 0x4, scoped, tag = 'scoped memory for gnn_forward.1']
    #allocation4 [shape = 's32[1]{0}', space=sflag, size = 0x4, scoped, tag = 'scoped memory for gnn_forward.1']
    #allocation5 [shape = 'u8[32768]{0}', space=vmem, size = 0x8000, scoped, tag = 'input window, operand 2, single buffered']
    #allocation6 [shape = 's32[1]{0}', space=sflag, size = 0x4, scoped, tag = 'scoped memory for gnn_forward.1']
    #allocation7 [shape = 'u8[8192]{0}', space=vmem, size = 0x2000, scoped, tag = 'output window, operand 0, single buffered']
    %9 = vsyncpa [#allocation3], 0
    %10 = vsyncpa [#allocation6], 0
    %11 = vsyncpa [#allocation4], 0
    // Predicated region
    $region2: #{gnn_forward.1} parent=1 // pred_check
      _
    $region3: #{gnn_forward.1} parent=1 // pred_check_branch
      %13 = sbr.rel (0) target = $region5
    $region4: #{gnn_forward.1} parent=1 // pred_region
      _
    $region5: #{gnn_forward.1} parent=1 // pred_fallthru
      _
    // Predicated region
    $region6: #{gnn_forward.1} parent=1 // pred_check
      _
    $region7: #{gnn_forward.1} parent=1 // pred_check_branch
      %15 = sbr.rel (0) target = $region9
    $region8: #{gnn_forward.1} parent=1 // pred_region
      %s17 = ssub.s32 256, 256
      %18 = vsyncadd [#allocation3], %s17
      %s19 = sshll.u32 [#allocation2], 4
      %s20 = int_to_ptr.vmem [resolvable:$true] %s19
      %25 = dma.hbm_to_vmem [thread:$0]  %s1, 256, %s20, [#allocation3], 128, 128, 8
    $region9: #{gnn_forward.1} parent=1 // pred_fallthru
      _
    // Predicated region
    $region10: #{gnn_forward.1} parent=1 // pred_check
      _
    $region11: #{gnn_forward.1} parent=1 // pred_check_branch
      %27 = sbr.rel (0) target = $region13
    $region12: #{gnn_forward.1} parent=1 // pred_region
      %s29 = ssub.s32 1024, 1024
      %30 = vsyncadd [#allocation6], %s29
      %s31 = sshll.u32 [#allocation5], 4
      %s32 = int_to_ptr.vmem [resolvable:$true] %s31
      %37 = dma.hbm_to_vmem [thread:$0]  %s2, 1024, %s32, [#allocation6], 128, 128, 8
    $region13: #{gnn_forward.1} parent=1 // pred_fallthru
      _
    // Predicated region
    $region14: #{gnn_forward.1} parent=1 // pred_check
      _
    $region15: #{gnn_forward.1} parent=1 // pred_check_branch
      %39 = sbr.rel (0) target = $region17
    $region16: #{gnn_forward.1} parent=1 // pred_region
      _
    $region17: #{gnn_forward.1} parent=1 // pred_fallthru
      _
    // Predicated region
    $region18: #{gnn_forward.1} parent=1 // pred_check
      _
    $region19: #{gnn_forward.1} parent=1 // pred_check_branch
      %41 = sbr.rel (0) target = $region21
    $region20: #{gnn_forward.1} parent=1 // pred_region
      %42 = dma.done [#allocation3], 256
    $region21: #{gnn_forward.1} parent=1 // pred_fallthru
      _
    // Predicated region
    $region22: #{gnn_forward.1} parent=1 // pred_check
      _
    $region23: #{gnn_forward.1} parent=1 // pred_check_branch
      %44 = sbr.rel (0) target = $region25
    $region24: #{gnn_forward.1} parent=1 // pred_region
      %45 = dma.done [#allocation6], 1024
    $region25: #{gnn_forward.1} parent=1 // pred_fallthru
      _
    %v46 = vld [vmem:[%s0] sm:$0x1]
    %v47 = vld [vmem:[%s0 + $0x1] sm:$0x1]
    %v48 = vlaneseq
    %v49 = vshrl.u32 %v48, 7
    %v50 = vadd.s32 %v49, 8
    %v51 = vlaneseq
    %v52 = vshrl.u32 %v51, 7
    %v53 = vsub.s32 0, %v52
    %v54 = vrot.slane %v46, %v53
    %vm55 = vcmp.eq.s32.totalorder %v49, %v54
    %vm56 = vcmp.eq.s32.totalorder %v50, %v54
    %v57 = vsel %vm55, 1, 0
    %v58 = vsel %vm56, 1, 0
    %v59 = vcvt.s32.f32 %v57
    %v60 = vcvt.s32.f32 %v58
    %v61 = vlaneseq
    %v62 = vshrl.u32 %v61, 7
    %v63 = vsub.s32 0, %v62
    %v64 = vrot.slane %v47, %v63
    %vm65 = vcmp.eq.s32.totalorder %v49, %v64
    %vm66 = vcmp.eq.s32.totalorder %v50, %v64
    %v67 = vsel %vm65, 1, 0
    %v68 = vsel %vm66, 1, 0
    %v69 = vcvt.s32.f32 %v67
    %v70 = vcvt.s32.f32 %v68
    %v71 = vlaneseq
    %v72 = vand.u32 %v71, 127
    %vm73 = vcmp.eq.s32.totalorder %v49, %v72
    %vm74 = vcmp.eq.s32.totalorder %v50, %v72
    %v75 = vsel %vm73, 1, 0
    %v76 = vsel %vm74, 1, 0
    %v77 = vcvt.s32.f32 %v75
    %v78 = vcvt.s32.f32 %v76
    %vm79 = vcmask 326656
    %v81 = vsel %vm79, %v69, 0
    %v84 = vsel %vm79, %v70, 0
    %v87 = vsel %vm79, %v59, 0
    %v90 = vsel %vm79, %v60, 0
    %92 = vmatprep.subr.mxu0 0.0
    %93 = vmatpush1.xpose.msra.mxu0 %v87
    %94 = vmatprep.subr.mxu0 0.0
    %95 = vmatpush1.xpose.msra.mxu0 %v90
    %96 = vmatprep.subr.mxu0 0.0
    %97 = vmatpush1.xpose.msra.mxu0 0.0
    %98 = vmatprep.subr.mxu0 0.0
    %99 = vmatpush1.xpose.msra.mxu0 0.0
    %100 = vmatprep.subr.mxu0 0.0
    %101 = vmatpush1.xpose.msra.mxu0 0.0
    %102 = vmatprep.subr.mxu0 0.0
    %103 = vmatpush1.xpose.msra.mxu0 0.0
    %104 = vmatprep.subr.mxu0 0.0
    %105 = vmatpush1.xpose.msra.mxu0 0.0
    %106 = vmatprep.subr.mxu0 0.0
    %107 = vmatpush1.xpose.msra.mxu0 0.0
    %108 = vmatprep.subr.mxu0 0.0
    %109 = vmatpush1.xpose.msra.mxu0 0.0
    %110 = vmatprep.subr.mxu0 0.0
    %111 = vmatpush1.xpose.msra.mxu0 0.0
    %112 = vmatprep.subr.mxu0 0.0
    %113 = vmatpush1.xpose.msra.mxu0 0.0
    %114 = vmatprep.subr.mxu0 0.0
    %115 = vmatpush1.xpose.msra.mxu0 0.0
    %116 = vmatprep.subr.mxu0 0.0
    %117 = vmatpush1.xpose.msra.mxu0 0.0
    %118 = vmatprep.subr.mxu0 0.0
    %119 = vmatpush1.xpose.msra.mxu0 0.0
    %120 = vmatprep.subr.mxu0 0.0
    %121 = vmatpush1.xpose.msra.mxu0 0.0
    %122 = vmatprep.subr.mxu0 0.0
    %123 = vmatpush1.xpose.msra.mxu0 0.0
    %124 = vmatprep.subr.mxu0 0.0
    %125 = vmatpush1.xpose.msra.mxu0 0.0
    %126 = vmatprep.subr.mxu0 0.0
    %127 = vmatpush1.xpose.msra.mxu0 0.0
    %128 = vmatprep.subr.mxu0 0.0
    %129 = vmatpush1.xpose.msra.mxu0 0.0
    %130 = vmatprep.subr.mxu0 0.0
    %131 = vmatpush1.xpose.msra.mxu0 0.0
    %132 = vmatprep.subr.mxu0 0.0
    %133 = vmatpush1.xpose.msra.mxu0 0.0
    %134 = vmatprep.subr.mxu0 0.0
    %135 = vmatpush1.xpose.msra.mxu0 0.0
    %136 = vmatprep.subr.mxu0 0.0
    %137 = vmatpush1.xpose.msra.mxu0 0.0
    %138 = vmatprep.subr.mxu0 0.0
    %139 = vmatpush1.xpose.msra.mxu0 0.0
    %140 = vmatprep.subr.mxu0 0.0
    %141 = vmatpush1.xpose.msra.mxu0 0.0
    %142 = vmatprep.subr.mxu0 0.0
    %143 = vmatpush1.xpose.msra.mxu0 0.0
    %144 = vmatprep.subr.mxu0 0.0
    %145 = vmatpush1.xpose.msra.mxu0 0.0
    %146 = vmatprep.subr.mxu0 0.0
    %147 = vmatpush1.xpose.msra.mxu0 0.0
    %148 = vmatprep.subr.mxu0 0.0
    %149 = vmatpush1.xpose.msra.mxu0 0.0
    %150 = vmatprep.subr.mxu0 0.0
    %151 = vmatpush1.xpose.msra.mxu0 0.0
    %152 = vmatprep.subr.mxu0 0.0
    %153 = vmatpush1.xpose.msra.mxu0 0.0
    %154 = vmatprep.subr.mxu0 0.0
    %155 = vmatpush1.xpose.msra.mxu0 0.0
    %156 = vmatprep.mubr.f32.mxu0 0.0
    %157 = vmatmul.mubr.f32.gmra.mrb[0].mxu0 %v81
    %v158 = vpop.f32.mrb[0].mxu0
    %v159 = vadd.f32 %v77, %v158
    %v160 = vpop.f32.mrb[0].mxu0
    %161 = vmatprep.mubr.f32.mxu0 0.0
    %162 = vmatmul.mubr.f32.gmra.mrb[0].mxu0 %v84
    %v163 = vpop.f32.mrb[0].mxu0
    %v164 = vadd.f32 %v78, %v163
    %v165 = vpop.f32.mrb[0].mxu0
    %166 = vdwg.mxu0
    %vm167 = vcmask 130048
    %v168 = vsel %vm167, %v159, 0.0
    %169 = vadd.xlane.f32.xlu0 %v168
    %v170 = vpop.xlane.xlu0 %169
    %v171 = vsel %vm167, %v164, 0.0
    %172 = vadd.xlane.f32.xlu0 %v171
    %v173 = vpop.xlane.xlu0 %172
    %v174 = vrsqrt.pop %v170
    %v175 = vrsqrt.pop %v173
    %v176 = vld [vmem:[#allocation2] sm:$0xff]
    %v177 = vld [vmem:[#allocation2 + $0x8] sm:$0xff]
    %v178 = vld [vmem:[#allocation5] sm:$0xff]
    %v179 = vld [vmem:[#allocation5 + $0x8] sm:$0xff]
    %v180 = vld [vmem:[#allocation5 + $0x10] sm:$0xff]
    %v181 = vld [vmem:[#allocation5 + $0x18] sm:$0xff]
    %v182 = vld [vmem:[%s3] sm:$0x1]
    %vm183 = vcmask 261120
    %v185 = vsel %vm183, %v176, 0
    %v188 = vsel %vm183, %v177, 0
    %190 = vmatprep.subr.mxu0 0.0
    %191 = vmatpush1.msra.mxu0 %v178
    %192 = vmatprep.subr.mxu0 0.0
    %193 = vmatpush1.msra.mxu0 %v179
    %194 = vmatprep.subr.mxu0 0.0
    %195 = vmatpush1.msra.mxu0 %v180
    %196 = vmatprep.subr.mxu0 0.0
    %197 = vmatpush1.msra.mxu0 %v181
    %198 = vmatprep.subr.mxu0 0.0
    %199 = vmatpush1.msra.mxu0 0.0
    %200 = vmatprep.subr.mxu0 0.0
    %201 = vmatpush1.msra.mxu0 0.0
    %202 = vmatprep.subr.mxu0 0.0
    %203 = vmatpush1.msra.mxu0 0.0
    %204 = vmatprep.subr.mxu0 0.0
    %205 = vmatpush1.msra.mxu0 0.0
    %206 = vmatprep.subr.mxu0 0.0
    %207 = vmatpush1.msra.mxu0 0.0
    %208 = vmatprep.subr.mxu0 0.0
    %209 = vmatpush1.msra.mxu0 0.0
    %210 = vmatprep.subr.mxu0 0.0
    %211 = vmatpush1.msra.mxu0 0.0
    %212 = vmatprep.subr.mxu0 0.0
    %213 = vmatpush1.msra.mxu0 0.0
    %214 = vmatprep.subr.mxu0 0.0
    %215 = vmatpush1.msra.mxu0 0.0
    %216 = vmatprep.subr.mxu0 0.0
    %217 = vmatpush1.msra.mxu0 0.0
    %218 = vmatprep.subr.mxu0 0.0
    %219 = vmatpush1.msra.mxu0 0.0
    %220 = vmatprep.subr.mxu0 0.0
    %221 = vmatpush1.msra.mxu0 0.0
    %222 = vmatprep.subr.mxu0 0.0
    %223 = vmatpush1.msra.mxu0 0.0
    %224 = vmatprep.subr.mxu0 0.0
    %225 = vmatpush1.msra.mxu0 0.0
    %226 = vmatprep.subr.mxu0 0.0
    %227 = vmatpush1.msra.mxu0 0.0
    %228 = vmatprep.subr.mxu0 0.0
    %229 = vmatpush1.msra.mxu0 0.0
    %230 = vmatprep.subr.mxu0 0.0
    %231 = vmatpush1.msra.mxu0 0.0
    %232 = vmatprep.subr.mxu0 0.0
    %233 = vmatpush1.msra.mxu0 0.0
    %234 = vmatprep.subr.mxu0 0.0
    %235 = vmatpush1.msra.mxu0 0.0
    %236 = vmatprep.subr.mxu0 0.0
    %237 = vmatpush1.msra.mxu0 0.0
    %238 = vmatprep.subr.mxu0 0.0
    %239 = vmatpush1.msra.mxu0 0.0
    %240 = vmatprep.subr.mxu0 0.0
    %241 = vmatpush1.msra.mxu0 0.0
    %242 = vmatprep.subr.mxu0 0.0
    %243 = vmatpush1.msra.mxu0 0.0
    %244 = vmatprep.subr.mxu0 0.0
    %245 = vmatpush1.msra.mxu0 0.0
    %246 = vmatprep.subr.mxu0 0.0
    %247 = vmatpush1.msra.mxu0 0.0
    %248 = vmatprep.subr.mxu0 0.0
    %249 = vmatpush1.msra.mxu0 0.0
    %250 = vmatprep.subr.mxu0 0.0
    %251 = vmatpush1.msra.mxu0 0.0
    %252 = vmatprep.subr.mxu0 0.0
    %253 = vmatpush1.msra.mxu0 0.0
    %254 = vmatprep.mubr.f32.mxu0 0.0
    %255 = vmatmul.mubr.f32.gmra.mrb[0].mxu0 %v185
    %v256 = vpop.f32.mrb[0].mxu0
    %v257 = vadd.f32 0.0, %v256
    %v258 = vpop.f32.mrb[0].mxu0
    %259 = vmatprep.mubr.f32.mxu0 0.0
    %260 = vmatmul.mubr.f32.gmra.mrb[0].mxu0 %v188
    %v261 = vpop.f32.mrb[0].mxu0
    %v262 = vadd.f32 0.0, %v261
    %v263 = vpop.f32.mrb[0].mxu0
    %264 = vdwg.mxu0
    %v265 = vmul.f32 %v174, %v257
    %v266 = vmul.f32 %v175, %v262
    %v268 = vsel %vm167, %v159, 0
    %v271 = vsel %vm167, %v164, 0
    %273 = vmatprep.subr.mxu0 0.0
    %274 = vmatpush1.msra.mxu0 %v265
    %275 = vmatprep.subr.mxu0 0.0
    %276 = vmatpush1.msra.mxu0 %v266
    %277 = vmatprep.subr.mxu0 0.0
    %278 = vmatpush1.msra.mxu0 0.0
    %279 = vmatprep.subr.mxu0 0.0
    %280 = vmatpush1.msra.mxu0 0.0
    %281 = vmatprep.subr.mxu0 0.0
    %282 = vmatpush1.msra.mxu0 0.0
    %283 = vmatprep.subr.mxu0 0.0
    %284 = vmatpush1.msra.mxu0 0.0
    %285 = vmatprep.subr.mxu0 0.0
    %286 = vmatpush1.msra.mxu0 0.0
    %287 = vmatprep.subr.mxu0 0.0
    %288 = vmatpush1.msra.mxu0 0.0
    %289 = vmatprep.subr.mxu0 0.0
    %290 = vmatpush1.msra.mxu0 0.0
    %291 = vmatprep.subr.mxu0 0.0
    %292 = vmatpush1.msra.mxu0 0.0
    %293 = vmatprep.subr.mxu0 0.0
    %294 = vmatpush1.msra.mxu0 0.0
    %295 = vmatprep.subr.mxu0 0.0
    %296 = vmatpush1.msra.mxu0 0.0
    %297 = vmatprep.subr.mxu0 0.0
    %298 = vmatpush1.msra.mxu0 0.0
    %299 = vmatprep.subr.mxu0 0.0
    %300 = vmatpush1.msra.mxu0 0.0
    %301 = vmatprep.subr.mxu0 0.0
    %302 = vmatpush1.msra.mxu0 0.0
    %303 = vmatprep.subr.mxu0 0.0
    %304 = vmatpush1.msra.mxu0 0.0
    %305 = vmatprep.subr.mxu0 0.0
    %306 = vmatpush1.msra.mxu0 0.0
    %307 = vmatprep.subr.mxu0 0.0
    %308 = vmatpush1.msra.mxu0 0.0
    %309 = vmatprep.subr.mxu0 0.0
    %310 = vmatpush1.msra.mxu0 0.0
    %311 = vmatprep.subr.mxu0 0.0
    %312 = vmatpush1.msra.mxu0 0.0
    %313 = vmatprep.subr.mxu0 0.0
    %314 = vmatpush1.msra.mxu0 0.0
    %315 = vmatprep.subr.mxu0 0.0
    %316 = vmatpush1.msra.mxu0 0.0
    %317 = vmatprep.subr.mxu0 0.0
    %318 = vmatpush1.msra.mxu0 0.0
    %319 = vmatprep.subr.mxu0 0.0
    %320 = vmatpush1.msra.mxu0 0.0
    %321 = vmatprep.subr.mxu0 0.0
    %322 = vmatpush1.msra.mxu0 0.0
    %323 = vmatprep.subr.mxu0 0.0
    %324 = vmatpush1.msra.mxu0 0.0
    %325 = vmatprep.subr.mxu0 0.0
    %326 = vmatpush1.msra.mxu0 0.0
    %327 = vmatprep.subr.mxu0 0.0
    %328 = vmatpush1.msra.mxu0 0.0
    %329 = vmatprep.subr.mxu0 0.0
    %330 = vmatpush1.msra.mxu0 0.0
    %331 = vmatprep.subr.mxu0 0.0
    %332 = vmatpush1.msra.mxu0 0.0
    %333 = vmatprep.subr.mxu0 0.0
    %334 = vmatpush1.msra.mxu0 0.0
    %335 = vmatprep.subr.mxu0 0.0
    %336 = vmatpush1.msra.mxu0 0.0
    %337 = vmatprep.mubr.f32.mxu0 0.0
    %338 = vmatmul.mubr.f32.gmra.mrb[0].mxu0 %v268
    %v339 = vpop.f32.mrb[0].mxu0
    %v340 = vadd.f32 0.0, %v339
    %v341 = vpop.f32.mrb[0].mxu0
    %342 = vmatprep.mubr.f32.mxu0 0.0
    %343 = vmatmul.mubr.f32.gmra.mrb[0].mxu0 %v271
    %v344 = vpop.f32.mrb[0].mxu0
    %v345 = vadd.f32 0.0, %v344
    %v346 = vpop.f32.mrb[0].mxu0
    %347 = vdwg.mxu0
    %v348 = vmul.f32 %v174, %v340
    %v349 = vmul.f32 %v175, %v345
    %v351 = vlaneseq
    %v352 = vshrl.u32 %v351, 7
    %v353 = vsub.s32 0, %v352
    %v354 = vrot.slane %v182, %v353
    %v356 = vadd.f32 %v348, %v354
    %v357 = vadd.f32 %v349, %v354
    %v358 = vmax.f32 %v356, 0.0
    %v359 = vmax.f32 %v357, 0.0
    %s360 = scalar_lea.vmem [#allocation5], 32
    %v361 = vld [vmem:[%s360] sm:$0xff]
    %v362 = vld [vmem:[%s360 + $0x8] sm:$0xff]
    %v363 = vld [vmem:[%s360 + $0x10] sm:$0xff]
    %v364 = vld [vmem:[%s360 + $0x18] sm:$0xff]
    %s365 = scalar_lea.vmem %s3, 1
    %v366 = vld [vmem:[%s365] sm:$0x1]
    %v368 = vsel %vm183, %v358, 0
    %v371 = vsel %vm183, %v359, 0
    %373 = vmatprep.subr.mxu0 0.0
    %374 = vmatpush1.msra.mxu0 %v361
    %375 = vmatprep.subr.mxu0 0.0
    %376 = vmatpush1.msra.mxu0 %v362
    %377 = vmatprep.subr.mxu0 0.0
    %378 = vmatpush1.msra.mxu0 %v363
    %379 = vmatprep.subr.mxu0 0.0
    %380 = vmatpush1.msra.mxu0 %v364
    %381 = vmatprep.subr.mxu0 0.0
    %382 = vmatpush1.msra.mxu0 0.0
    %383 = vmatprep.subr.mxu0 0.0
    %384 = vmatpush1.msra.mxu0 0.0
    %385 = vmatprep.subr.mxu0 0.0
    %386 = vmatpush1.msra.mxu0 0.0
    %387 = vmatprep.subr.mxu0 0.0
    %388 = vmatpush1.msra.mxu0 0.0
    %389 = vmatprep.subr.mxu0 0.0
    %390 = vmatpush1.msra.mxu0 0.0
    %391 = vmatprep.subr.mxu0 0.0
    %392 = vmatpush1.msra.mxu0 0.0
    %393 = vmatprep.subr.mxu0 0.0
    %394 = vmatpush1.msra.mxu0 0.0
    %395 = vmatprep.subr.mxu0 0.0
    %396 = vmatpush1.msra.mxu0 0.0
    %397 = vmatprep.subr.mxu0 0.0
    %398 = vmatpush1.msra.mxu0 0.0
    %399 = vmatprep.subr.mxu0 0.0
    %400 = vmatpush1.msra.mxu0 0.0
    %401 = vmatprep.subr.mxu0 0.0
    %402 = vmatpush1.msra.mxu0 0.0
    %403 = vmatprep.subr.mxu0 0.0
    %404 = vmatpush1.msra.mxu0 0.0
    %405 = vmatprep.subr.mxu0 0.0
    %406 = vmatpush1.msra.mxu0 0.0
    %407 = vmatprep.subr.mxu0 0.0
    %408 = vmatpush1.msra.mxu0 0.0
    %409 = vmatprep.subr.mxu0 0.0
    %410 = vmatpush1.msra.mxu0 0.0
    %411 = vmatprep.subr.mxu0 0.0
    %412 = vmatpush1.msra.mxu0 0.0
    %413 = vmatprep.subr.mxu0 0.0
    %414 = vmatpush1.msra.mxu0 0.0
    %415 = vmatprep.subr.mxu0 0.0
    %416 = vmatpush1.msra.mxu0 0.0
    %417 = vmatprep.subr.mxu0 0.0
    %418 = vmatpush1.msra.mxu0 0.0
    %419 = vmatprep.subr.mxu0 0.0
    %420 = vmatpush1.msra.mxu0 0.0
    %421 = vmatprep.subr.mxu0 0.0
    %422 = vmatpush1.msra.mxu0 0.0
    %423 = vmatprep.subr.mxu0 0.0
    %424 = vmatpush1.msra.mxu0 0.0
    %425 = vmatprep.subr.mxu0 0.0
    %426 = vmatpush1.msra.mxu0 0.0
    %427 = vmatprep.subr.mxu0 0.0
    %428 = vmatpush1.msra.mxu0 0.0
    %429 = vmatprep.subr.mxu0 0.0
    %430 = vmatpush1.msra.mxu0 0.0
    %431 = vmatprep.subr.mxu0 0.0
    %432 = vmatpush1.msra.mxu0 0.0
    %433 = vmatprep.subr.mxu0 0.0
    %434 = vmatpush1.msra.mxu0 0.0
    %435 = vmatprep.subr.mxu0 0.0
    %436 = vmatpush1.msra.mxu0 0.0
    %437 = vmatprep.mubr.f32.mxu0 0.0
    %438 = vmatmul.mubr.f32.gmra.mrb[0].mxu0 %v368
    %v439 = vpop.f32.mrb[0].mxu0
    %v440 = vadd.f32 0.0, %v439
    %v441 = vpop.f32.mrb[0].mxu0
    %442 = vmatprep.mubr.f32.mxu0 0.0
    %443 = vmatmul.mubr.f32.gmra.mrb[0].mxu0 %v371
    %v444 = vpop.f32.mrb[0].mxu0
    %v445 = vadd.f32 0.0, %v444
    %v446 = vpop.f32.mrb[0].mxu0
    %447 = vdwg.mxu0
    %v448 = vmul.f32 %v174, %v440
    %v449 = vmul.f32 %v175, %v445
    %450 = vmatprep.subr.mxu0 0.0
    %451 = vmatpush1.msra.mxu0 %v448
    %452 = vmatprep.subr.mxu0 0.0
    %453 = vmatpush1.msra.mxu0 %v449
    %454 = vmatprep.subr.mxu0 0.0
    %455 = vmatpush1.msra.mxu0 0.0
    %456 = vmatprep.subr.mxu0 0.0
    %457 = vmatpush1.msra.mxu0 0.0
    %458 = vmatprep.subr.mxu0 0.0
    %459 = vmatpush1.msra.mxu0 0.0
    %460 = vmatprep.subr.mxu0 0.0
    %461 = vmatpush1.msra.mxu0 0.0
    %462 = vmatprep.subr.mxu0 0.0
    %463 = vmatpush1.msra.mxu0 0.0
    %464 = vmatprep.subr.mxu0 0.0
    %465 = vmatpush1.msra.mxu0 0.0
    %466 = vmatprep.subr.mxu0 0.0
    %467 = vmatpush1.msra.mxu0 0.0
    %468 = vmatprep.subr.mxu0 0.0
    %469 = vmatpush1.msra.mxu0 0.0
    %470 = vmatprep.subr.mxu0 0.0
    %471 = vmatpush1.msra.mxu0 0.0
    %472 = vmatprep.subr.mxu0 0.0
    %473 = vmatpush1.msra.mxu0 0.0
    %474 = vmatprep.subr.mxu0 0.0
    %475 = vmatpush1.msra.mxu0 0.0
    %476 = vmatprep.subr.mxu0 0.0
    %477 = vmatpush1.msra.mxu0 0.0
    %478 = vmatprep.subr.mxu0 0.0
    %479 = vmatpush1.msra.mxu0 0.0
    %480 = vmatprep.subr.mxu0 0.0
    %481 = vmatpush1.msra.mxu0 0.0
    %482 = vmatprep.subr.mxu0 0.0
    %483 = vmatpush1.msra.mxu0 0.0
    %484 = vmatprep.subr.mxu0 0.0
    %485 = vmatpush1.msra.mxu0 0.0
    %486 = vmatprep.subr.mxu0 0.0
    %487 = vmatpush1.msra.mxu0 0.0
    %488 = vmatprep.subr.mxu0 0.0
    %489 = vmatpush1.msra.mxu0 0.0
    %490 = vmatprep.subr.mxu0 0.0
    %491 = vmatpush1.msra.mxu0 0.0
    %492 = vmatprep.subr.mxu0 0.0
    %493 = vmatpush1.msra.mxu0 0.0
    %494 = vmatprep.subr.mxu0 0.0
    %495 = vmatpush1.msra.mxu0 0.0
    %496 = vmatprep.subr.mxu0 0.0
    %497 = vmatpush1.msra.mxu0 0.0
    %498 = vmatprep.subr.mxu0 0.0
    %499 = vmatpush1.msra.mxu0 0.0
    %500 = vmatprep.subr.mxu0 0.0
    %501 = vmatpush1.msra.mxu0 0.0
    %502 = vmatprep.subr.mxu0 0.0
    %503 = vmatpush1.msra.mxu0 0.0
    %504 = vmatprep.subr.mxu0 0.0
    %505 = vmatpush1.msra.mxu0 0.0
    %506 = vmatprep.subr.mxu0 0.0
    %507 = vmatpush1.msra.mxu0 0.0
    %508 = vmatprep.subr.mxu0 0.0
    %509 = vmatpush1.msra.mxu0 0.0
    %510 = vmatprep.subr.mxu0 0.0
    %511 = vmatpush1.msra.mxu0 0.0
    %512 = vmatprep.subr.mxu0 0.0
    %513 = vmatpush1.msra.mxu0 0.0
    %514 = vmatprep.mubr.f32.mxu0 0.0
    %515 = vmatmul.mubr.f32.gmra.mrb[0].mxu0 %v268
    %v516 = vpop.f32.mrb[0].mxu0
    %v517 = vadd.f32 0.0, %v516
    %v518 = vpop.f32.mrb[0].mxu0
    %519 = vmatprep.mubr.f32.mxu0 0.0
    %520 = vmatmul.mubr.f32.gmra.mrb[0].mxu0 %v271
    %v521 = vpop.f32.mrb[0].mxu0
    %v522 = vadd.f32 0.0, %v521
    %v523 = vpop.f32.mrb[0].mxu0
    %524 = vdwg.mxu0
    %v525 = vmul.f32 %v174, %v517
    %v526 = vmul.f32 %v175, %v522
    %v528 = vlaneseq
    %v529 = vshrl.u32 %v528, 7
    %v530 = vsub.s32 0, %v529
    %v531 = vrot.slane %v366, %v530
    %v533 = vadd.f32 %v525, %v531
    %v534 = vadd.f32 %v526, %v531
    %v535 = vmax.f32 %v533, 0.0
    %v536 = vmax.f32 %v534, 0.0
    %537 = vst.msk [vmem:[#allocation7] sm:$0xff] %vm183, %v535
    %538 = vst.msk [vmem:[#allocation7 + $0x8] sm:$0xff] %vm183, %v536
    // Predicated region
    $region26: #{gnn_forward.1} parent=1 // pred_check
      _
    $region27: #{gnn_forward.1} parent=1 // pred_check_branch
      %540 = sbr.rel (0) target = $region29
    $region28: #{gnn_forward.1} parent=1 // pred_region
      %s542 = ssub.s32 256, 256
      %543 = vsyncadd [#allocation4], %s542
      %s544 = sshll.u32 [#allocation7], 4
      %s545 = int_to_ptr.vmem [resolvable:$true] %s544
      %550 = dma.vmem_to_hbm [thread:$0]  %s545, 256, %s4, [#allocation4], 128, 128, 8
    $region29: #{gnn_forward.1} parent=1 // pred_fallthru
      _
    // Predicated region
    $region30: #{gnn_forward.1} parent=1 // pred_check
      _
    $region31: #{gnn_forward.1} parent=1 // pred_check_branch
      %552 = sbr.rel (0) target = $region33
    $region32: #{gnn_forward.1} parent=1 // pred_region
      %553 = dma.done [#allocation4], 256
    $region33: #{gnn_forward.1} parent=1 // pred_fallthru
      _
    %554 = vsyncpa [#allocation3], 1
    %555 = vsyncpa [#allocation6], 1
    %556 = vsyncpa [#allocation4], 1

</llo_original>
